<compile_context>
chip_gen: v5e
topology: v5e:2x2
jax: 0.10.0
libtpu: 0.0.40
codegen_flags: <defaults>
</compile_context>

<pallas_src>
import math

import jax
import jax.numpy as jnp
from jax.experimental import pallas as pl
from jax.experimental.pallas import tpu as pltpu


# ----------------------------- Pallas kernel --------------------------------

def _mcb_kernel(x_ref, wf_ref, wi_ref, o_ref):
    """Fused ReLU + (sketch∘forward-DFT) + complex product + inverse-DFT + L2 norm.

    x_ref:  (TM, C)   bf16 rows of the channel-last input
    wf_ref: (C, 4D)   bf16 columns = [p1@cos | p1@sin | p2@cos | p2@sin]
    wi_ref: (2D, D)   bf16 rows    = [cos/D ; sin/D]   (inverse DFT, 1/D folded)
    o_ref:  (TM, D)   bf16 L2-normalized MCB features
    """
    f32 = jnp.float32
    bf16 = jnp.bfloat16
    d = o_ref.shape[-1]

    x = jnp.maximum(x_ref[...], 0)                           # fused ReLU (bf16)

    # One wide forward matmul: count sketches folded into the DFT matrices.
    y = jnp.dot(x, wf_ref[...], preferred_element_type=f32)  # (TM, 4D) f32
    a1 = y[:, 0 * d:1 * d]
    b1 = y[:, 1 * d:2 * d]
    a2 = y[:, 2 * d:3 * d]
    b2 = y[:, 3 * d:4 * d]

    # Y1 = a1 - i*b1, Y2 = a2 - i*b2  ->  Y1*Y2 = zr - i*zi_neg
    zr = a1 * a2 - b1 * b2
    zi_neg = a1 * b2 + a2 * b1

    # Inverse DFT (real part) as a single stacked matmul: z = zr@(cos/D) + zi_neg@(sin/D).
    zf = jnp.concatenate([zr.astype(bf16), zi_neg.astype(bf16)], axis=-1)  # (TM, 2D)
    z = jnp.dot(zf, wi_ref[...], preferred_element_type=f32)               # (TM, D)

    # F.normalize along the channel (D) axis, eps = 1e-12.
    ssq = jnp.sum(z * z, axis=-1, keepdims=True)
    inv_norm = jax.lax.rsqrt(jnp.maximum(ssq, 1e-24))
    o_ref[...] = (z * inv_norm).astype(o_ref.dtype)


def _pick_tile(m, cap=256):
    """Largest divisor of m that is a multiple of 16 (bf16 sublane packing) and
    <= cap -> zero ragged-tile waste.  Falls back to multiple-of-8 divisors,
    then to a ragged 256-row tile (masked stores)."""
    for step in (16, 8):
        best = None
        for t in range(step, min(m, cap) + 1, step):
            if m % t == 0:
                best = t
        if best is not None:
            return best
    return min(m, 256)


def _mcb_pallas(rows, wf, wi, *, tm=None):
    """rows: (M, C) bf16 -> (M, D) bf16 L2-normalized MCB features."""
    M, C = rows.shape
    D = wi.shape[1]
    if tm is None:
        tm = _pick_tile(M)
    full = lambda i: (0, 0)
    return pl.pallas_call(
        _mcb_kernel,
        out_shape=jax.ShapeDtypeStruct((M, D), jnp.bfloat16),
        grid_spec=pltpu.PrefetchScalarGridSpec(
            num_scalar_prefetch=0,
            grid=(pl.cdiv(M, tm),),            # exact divisor in the common path
            in_specs=[
                pl.BlockSpec((tm, C), lambda i: (i, 0)),
                pl.BlockSpec(wf.shape, full),  # resident constant (C, 4D)
                pl.BlockSpec(wi.shape, full),  # resident constant (2D, D)
            ],
            out_specs=pl.BlockSpec((tm, D), lambda i: (i, 0)),
        ),
        compiler_params=pltpu.CompilerParams(
            dimension_semantics=("parallel",),           # megacore split over rows
            vmem_limit_bytes=48 * 1024 * 1024),          # headroom under v7x 64 MiB
    )(rows, wf, wi)


# ------------------------------- glue (JAX) ---------------------------------

def _dft_matrices(d):
    """Symmetric forward DFT matrices cos/sin(2*pi*n*k/d)."""
    idx = jnp.arange(d, dtype=jnp.int32)
    nk = (idx[:, None] * idx[None, :]) % d               # exact, keeps angle small
    ang = (2.0 * jnp.pi / d) * nk.astype(jnp.float32)
    return jnp.cos(ang), jnp.sin(ang)


def _tpp(x, out_side=(1, 2, 4)):
    """TemporalPyramidPool3D: (N, C, T, H, W) -> (N, C, sum(out_side), 1, 1)."""
    x = x.astype(jnp.float32)                            # robust pooling numerics
    _, _, t, h, w = x.shape
    outs = []
    for n in out_side:
        kt, kh, kw = math.ceil(t / n), math.ceil(h / n), math.ceil(w / n)
        st, sh, sw = math.floor(t / n), math.floor(h / n), math.floor(w / n)
        y = jax.lax.reduce_window(
            x, -jnp.inf, jax.lax.max,
            window_dimensions=(1, 1, kt, kh, kw),
            window_strides=(1, 1, st, sh, sw),
            padding="VALID")                             # MaxPool3d, no padding
        outs.append(jnp.mean(y, axis=(3, 4)))            # AdaptiveAvgPool3d((T',1,1))
    out = jnp.concatenate(outs, axis=2)
    return out[:, :, :, None, None]


def compact_bilinear_pool3d_forward(x, p1, p2, *, tm=None):
    """x: (N, C, T, H, W) f32; p1, p2: (C, D) signed one-hot sketch matrices."""
    n, c, t, h, w = x.shape
    d = p1.shape[1]
    dct, dst = _dft_matrices(d)
    hi = jax.lax.Precision.HIGHEST

    # Fold count sketches into the forward DFT (exact: signed one-hot rows just
    # permute/sign-flip cos/sin rows) and 1/D into the inverse DFT.
    wf = jnp.concatenate([jnp.dot(p1, dct, precision=hi),
                          jnp.dot(p1, dst, precision=hi),
                          jnp.dot(p2, dct, precision=hi),
                          jnp.dot(p2, dst, precision=hi)], axis=1)   # (C, 4D)
    wi = jnp.concatenate([dct, dst], axis=0) / d                     # (2D, D)

    # Channel-last rows (layout permute, no data blow-up): (M, C).
    rows = jnp.transpose(x, (0, 2, 3, 4, 1)).reshape(-1, c)

    bf = jnp.bfloat16
    out = _mcb_pallas(rows.astype(bf), wf.astype(bf), wi.astype(bf), tm=tm)  # (M, D) bf16

    feat = jnp.transpose(out.reshape(n, t, h, w, d), (0, 4, 1, 2, 3))
    return _tpp(feat)


# ------------------------------- reference ----------------------------------

def compact_bilinear_pool3d_reference(x, p1, p2):
    """Pure-JAX reference (rfft/irfft circular convolution) for checking."""
    n, c, t, h, w = x.shape
    d = p1.shape[1]
    rows = jnp.transpose(jnp.maximum(x, 0.0), (0, 2, 3, 4, 1)).reshape(-1, c)
    hi = jax.lax.Precision.HIGHEST
    s1 = jnp.dot(rows, p1, precision=hi)
    s2 = jnp.dot(rows, p2, precision=hi)
    z = jnp.fft.irfft(jnp.fft.rfft(s1, axis=-1) * jnp.fft.rfft(s2, axis=-1),
                      n=d, axis=-1)
    nrm = jnp.maximum(jnp.sqrt(jnp.sum(z * z, axis=-1, keepdims=True)), 1e-12)
    z = z / nrm
    feat = jnp.transpose(z.reshape(n, t, h, w, d), (0, 4, 1, 2, 3))
    return _tpp(feat)


# --------------------------------- main --------------------------------------

if __name__ == "__main__":
    key = jax.random.PRNGKey(0)
    k_x, k_h1, k_h2, k_s1, k_s2 = jax.random.split(key, 5)

    # Small version of the module's (B, 1024, 8, 7, 7) input: C = D = 128.
    N, C, T, H, W = 2, 128, 8, 7, 7
    D = C

    x = jax.random.normal(k_x, (N, C, T, H, W), dtype=jnp.float32)

    # Deterministic count-sketch parameters (see TODO at top).
    h1 = jax.random.randint(k_h1, (C,), 0, D)
    h2 = jax.random.randint(k_h2, (C,), 0, D)
    s1 = jnp.where(jax.random.bernoulli(k_s1, 0.5, (C,)), 1.0, -1.0)
    s2 = jnp.where(jax.random.bernoulli(k_s2, 0.5, (C,)), 1.0, -1.0)
    p1 = jax.nn.one_hot(h1, D, dtype=jnp.float32) * s1[:, None]
    p2 = jax.nn.one_hot(h2, D, dtype=jnp.float32) * s2[:, None]

    out = jax.block_until_ready(
        jax.jit(compact_bilinear_pool3d_forward)(x, p1, p2))
    ref = jax.block_until_ready(
        jax.jit(compact_bilinear_pool3d_reference)(x, p1, p2))

    assert out.shape == (N, D, 1 + 2 + 4, 1, 1), out.shape
    err = float(jnp.max(jnp.abs(out - ref)))
    # bf16 GEMM operands + bf16 normalized output vs pure-f32 rfft reference.
    assert err < 3e-2, err

    print("KERNEL_OK")
</pallas_src>

<mosaic_0001>
module attributes {stable_mosaic.version = 11 : i64} {
  func.func @_mcb_kernel(%arg0: i32, %arg1: memref<112x128xbf16, #tpu.memory_space<vmem>>, %arg2: memref<128x512xbf16, #tpu.memory_space<vmem>>, %arg3: memref<256x128xbf16, #tpu.memory_space<vmem>>, %arg4: memref<112x128xbf16, #tpu.memory_space<vmem>>) attributes {dimension_semantics = [#tpu.dimension_semantics<parallel>], iteration_bounds = array<i64: 7>, scalar_prefetch = 0 : i64, scratch_operands = 0 : i64, tpu.core_type = #tpu.core_type<tc>, window_params = [{transform_indices = @transform_0, window_bounds = array<i64: 112, 128>}, {pipeline_mode = #tpu.pipeline_mode<synchronous>, transform_indices = @transform_1, window_bounds = array<i64: 128, 512>}, {pipeline_mode = #tpu.pipeline_mode<synchronous>, transform_indices = @transform_2, window_bounds = array<i64: 256, 128>}, {transform_indices = @transform_3, window_bounds = array<i64: 112, 128>}]} {
    %c0 = arith.constant 0 : index
    %c0_0 = arith.constant 0 : index
    %0 = vector.load %arg1[%c0, %c0_0] : memref<112x128xbf16, #tpu.memory_space<vmem>>, vector<112x128xbf16>
    %cst = arith.constant 0.000000e+00 : bf16
    %1 = vector.broadcast %cst : bf16 to vector<112x128xbf16>
    %2 = arith.maximumf %0, %1 : vector<112x128xbf16>
    %c0_1 = arith.constant 0 : index
    %c0_2 = arith.constant 0 : index
    %3 = vector.load %arg2[%c0_1, %c0_2] : memref<128x512xbf16, #tpu.memory_space<vmem>>, vector<128x512xbf16>
    %cst_3 = arith.constant dense<0.000000e+00> : vector<112x512xf32>
    %4 = tpu.matmul %2, %3, %cst_3 {dimension_numbers = #tpu.dot_dimension_numbers<[1], [0], [0], [1], [0, 0, 1, 1], [], []>} : vector<112x128xbf16>, vector<128x512xbf16>, vector<112x512xf32> -> vector<112x512xf32>
    %5 = vector.extract_strided_slice %4 {offsets = [0, 0], sizes = [112, 128], strides = [1, 1]} : vector<112x512xf32> to vector<112x128xf32>
    %6 = vector.extract_strided_slice %4 {offsets = [0, 128], sizes = [112, 128], strides = [1, 1]} : vector<112x512xf32> to vector<112x128xf32>
    %7 = vector.extract_strided_slice %4 {offsets = [0, 256], sizes = [112, 128], strides = [1, 1]} : vector<112x512xf32> to vector<112x128xf32>
    %8 = vector.extract_strided_slice %4 {offsets = [0, 384], sizes = [112, 128], strides = [1, 1]} : vector<112x512xf32> to vector<112x128xf32>
    %9 = arith.mulf %5, %7 : vector<112x128xf32>
    %10 = arith.mulf %6, %8 : vector<112x128xf32>
    %11 = arith.subf %9, %10 : vector<112x128xf32>
    %12 = arith.mulf %5, %8 : vector<112x128xf32>
    %13 = arith.mulf %7, %6 : vector<112x128xf32>
    %14 = arith.addf %12, %13 : vector<112x128xf32>
    %15 = arith.truncf %11 : vector<112x128xf32> to vector<112x128xbf16>
    %16 = arith.truncf %14 : vector<112x128xf32> to vector<112x128xbf16>
    %17 = tpu.concatenate %15, %16 in 1 : vector<112x128xbf16>, vector<112x128xbf16> -> vector<112x256xbf16>
    %c0_4 = arith.constant 0 : index
    %c0_5 = arith.constant 0 : index
    %18 = vector.load %arg3[%c0_4, %c0_5] : memref<256x128xbf16, #tpu.memory_space<vmem>>, vector<256x128xbf16>
    %cst_6 = arith.constant dense<0.000000e+00> : vector<112x128xf32>
    %19 = tpu.matmul %17, %18, %cst_6 {dimension_numbers = #tpu.dot_dimension_numbers<[1], [0], [0], [1], [0, 0, 1, 1], [], []>} : vector<112x256xbf16>, vector<256x128xbf16>, vector<112x128xf32> -> vector<112x128xf32>
    %20 = arith.mulf %19, %19 : vector<112x128xf32>
    %cst_7 = arith.constant dense<0.000000e+00> : vector<112xf32>
    %21 = vector.multi_reduction <add>, %20, %cst_7 [1] : vector<112x128xf32> to vector<112xf32>
    %22 = vector.shape_cast %21 : vector<112xf32> to vector<112x1xf32>
    %cst_8 = arith.constant 1.000000e-24 : f32
    %23 = vector.broadcast %cst_8 : f32 to vector<112x1xf32>
    %24 = arith.maximumf %22, %23 : vector<112x1xf32>
    %25 = math.rsqrt %24 : vector<112x1xf32>
    %26 = vector.broadcast %25 : vector<112x1xf32> to vector<112x128xf32>
    %27 = arith.mulf %19, %26 : vector<112x128xf32>
    %28 = arith.truncf %27 : vector<112x128xf32> to vector<112x128xbf16>
    %c0_9 = arith.constant 0 : index
    %c0_10 = arith.constant 0 : index
    %29 = vector.load %arg4[%c0_9, %c0_10] : memref<112x128xbf16, #tpu.memory_space<vmem>>, vector<112x128xbf16>
    tpu.vector_store %arg4[%c0_9, %c0_10], %28 {strides = array<i32>} : memref<112x128xbf16, #tpu.memory_space<vmem>>, vector<112x128xbf16>,
    return
  }
  func.func @transform_0(%arg0: i32) -> (i32, i32) {
    %c0_i32 = arith.constant 0 : i32
    %c0_i32_0 = arith.constant 0 : i32
    return %arg0, %c0_i32 : i32, i32
  }
  func.func @transform_1(%arg0: i32) -> (i32, i32) {
    %c0_i32 = arith.constant 0 : i32
    %c0_i32_0 = arith.constant 0 : i32
    %c0_i32_1 = arith.constant 0 : i32
    return %c0_i32, %c0_i32_0 : i32, i32
  }
  func.func @transform_2(%arg0: i32) -> (i32, i32) {
    %c0_i32 = arith.constant 0 : i32
    %c0_i32_0 = arith.constant 0 : i32
    %c0_i32_1 = arith.constant 0 : i32
    return %c0_i32, %c0_i32_0 : i32, i32
  }
  func.func @transform_3(%arg0: i32) -> (i32, i32) {
    %c0_i32 = arith.constant 0 : i32
    %c0_i32_0 = arith.constant 0 : i32
    return %arg0, %c0_i32 : i32, i32
  }
}

</mosaic_0001>

<llo_original>
// kernel: compact_bilinear_pool3d_forward.1
$region0: #{compact_bilinear_pool3d_forward.1}
  #allocation0 [shape = 'u32[]', space=smem, size = 0x4, offset = 0x4, fixed_abs, tag = 'smem constant byte address 0x4 - core index']
  #allocation1 [shape = 'u32[72,128]{1,0:T(1,128)}', space=vmem, size = 0x9000, scoped, tag = 'internal scratch']
  %s0 = inlined_call_operand.vmem [shape: bf16[784,128], index: 0, kind: input, shape index: {}]
  %s1 = inlined_call_operand.vmem [shape: bf16[128,512], index: 1, kind: input, shape index: {}]
  %s2 = inlined_call_operand.vmem [shape: bf16[256,128], index: 2, kind: input, shape index: {}]
  %s3 = inlined_call_operand.vmem [shape: bf16[784,128], index: 3, kind: output, shape index: {}]
  %s4 = sld [smem:[#allocation0]]
  $region45: #{compact_bilinear_pool3d_forward.1} parent=0
    _
  %s6 = ssub.s32 1, %s4
  %s7 = scalar_select 0, %s6, %s4
  loop: start=0, step=1, limit=9
  $region2: #{compact_bilinear_pool3d_forward.1} parent=0 // loop_pre_header
    _
  $region3: #{compact_bilinear_pool3d_forward.1} parent=0 // loop_header
    %s9 = sphi 0, %s13
    %p10 = scmp.ge.s32.totalorder %s9, 9
    %s19 = sphi 0, %s21
    %s22 = sphi 0, %s19
    %s23 = sphi 0, %s22
    %s39 = sphi 0, %s23
    %s43 = sphi 0, %s43
    %s45 = sphi 0, %s43
    %s46 = sphi 0, %s45
    %s60 = sphi 0, %s46
    %s64 = sphi 0, %s64
    %s66 = sphi 0, %s64
    %s67 = sphi 0, %s66
    %s81 = sphi 0, %s67
    %s87 = sphi 0, %s89
    %s90 = sphi 0, %s87
    %s91 = sphi 0, %s90
    %s107 = sphi 0, %s91
  $region4: #{compact_bilinear_pool3d_forward.1} parent=0 // loop_header_branch
    %12 = sbr.rel (%p10) target = $region8
  $region5: #{compact_bilinear_pool3d_forward.1} parent=0 // loop_body
    %s14 = ssub.s32 %s9, 1
    %s15 = ssub.s32 %s9, 2
    %s16 = sadd.s32 %s9, 1
    %s17 = ssub.s32 %s9, %s16
    %p18 = scmp.eq.s32.totalorder %s17, 0
    %s20 = sadd.s32 %s19, 1
    %s21 = scalar_select %p18, %s19, %s20
    %p24 = pneg %p18
    %p25 = scmp.eq.s32.totalorder %s9, 6
    %p26 = por %p24, %p25
    %p27 = scmp.ne.s32.totalorder %s19, %s22
    %p28 = scmp.eq.s32.totalorder %s9, 0
    %p29 = por %p27, %p28
    %p30 = scmp.ne.s32.totalorder %s19, %s22
    %p31 = scmp.eq.s32.totalorder %s14, 6
    %p32 = por %p30, %p31
    %p33 = scmp.ne.s32.totalorder %s22, %s23
    %p34 = scmp.eq.s32.totalorder %s14, 0
    %p35 = por %p33, %p34
    %p36 = scmp.ne.s32.totalorder %s22, %s23
    %p37 = scmp.eq.s32.totalorder %s15, 6
    %p38 = por %p36, %p37
    %p40 = scmp.ne.s32.totalorder %s23, %s39
    %p41 = scmp.eq.s32.totalorder %s15, 0
    %p42 = por %p40, %p41
    %s44 = sadd.s32 %s43, 1
    %p47 = scmp.eq.s32.totalorder %s9, 6
    %p48 = scmp.ne.s32.totalorder %s43, %s45
    %p49 = scmp.eq.s32.totalorder %s9, 0
    %p50 = por %p48, %p49
    %p51 = scmp.ne.s32.totalorder %s43, %s45
    %p52 = scmp.eq.s32.totalorder %s14, 6
    %p53 = por %p51, %p52
    %p54 = scmp.ne.s32.totalorder %s45, %s46
    %p55 = scmp.eq.s32.totalorder %s14, 0
    %p56 = por %p54, %p55
    %p57 = scmp.ne.s32.totalorder %s45, %s46
    %p58 = scmp.eq.s32.totalorder %s15, 6
    %p59 = por %p57, %p58
    %p61 = scmp.ne.s32.totalorder %s46, %s60
    %p62 = scmp.eq.s32.totalorder %s15, 0
    %p63 = por %p61, %p62
    %s65 = sadd.s32 %s64, 1
    %p68 = scmp.eq.s32.totalorder %s9, 6
    %p69 = scmp.ne.s32.totalorder %s64, %s66
    %p70 = scmp.eq.s32.totalorder %s9, 0
    %p71 = por %p69, %p70
    %p72 = scmp.ne.s32.totalorder %s64, %s66
    %p73 = scmp.eq.s32.totalorder %s14, 6
    %p74 = por %p72, %p73
    %p75 = scmp.ne.s32.totalorder %s66, %s67
    %p76 = scmp.eq.s32.totalorder %s14, 0
    %p77 = por %p75, %p76
    %p78 = scmp.ne.s32.totalorder %s66, %s67
    %p79 = scmp.eq.s32.totalorder %s15, 6
    %p80 = por %p78, %p79
    %p82 = scmp.ne.s32.totalorder %s67, %s81
    %p83 = scmp.eq.s32.totalorder %s15, 0
    %p84 = por %p82, %p83
    %s85 = ssub.s32 %s9, %s16
    %p86 = scmp.eq.s32.totalorder %s85, 0
    %s88 = sadd.s32 %s87, 1
    %s89 = scalar_select %p86, %s87, %s88
    %p92 = pneg %p86
    %p93 = scmp.eq.s32.totalorder %s9, 6
    %p94 = por %p92, %p93
    %p95 = scmp.ne.s32.totalorder %s87, %s90
    %p96 = scmp.eq.s32.totalorder %s9, 0
    %p97 = por %p95, %p96
    %p98 = scmp.ne.s32.totalorder %s87, %s90
    %p99 = scmp.eq.s32.totalorder %s14, 6
    %p100 = por %p98, %p99
    %p101 = scmp.ne.s32.totalorder %s90, %s91
    %p102 = scmp.eq.s32.totalorder %s14, 0
    %p103 = por %p101, %p102
    %p104 = scmp.ne.s32.totalorder %s90, %s91
    %p105 = scmp.eq.s32.totalorder %s15, 6
    %p106 = por %p104, %p105
    %p108 = scmp.ne.s32.totalorder %s91, %s107
    %p109 = scmp.eq.s32.totalorder %s15, 0
    %p110 = por %p108, %p109
    %p111 = scmp.le.s32.totalorder 1, %s9
    %p112 = scmp.lt.s32.totalorder %s9, 8
    %p113 = pnand %p111, %p112
    %p114 = pneg %p113
    // Predicated region
    $region9: #{compact_bilinear_pool3d_forward.1} parent=5 // pred_check
      _
    $region10: #{compact_bilinear_pool3d_forward.1} parent=5 // pred_check_branch
      %116 = sbr.rel (%p113) target = $region12
    $region11: #{compact_bilinear_pool3d_forward.1} parent=5 // pred_region
      %s117 = ssub.s32 %s9, 1
      // Predicated region
      $region13: #{compact_bilinear_pool3d_forward.1} parent=11 // pred_check
        %p118 = pneg %p56
      $region14: #{compact_bilinear_pool3d_forward.1} parent=11 // pred_check_branch
        %120 = sbr.rel (%p118) target = $region16
      $region15: #{compact_bilinear_pool3d_forward.1} parent=11 // pred_region
        _
      $region16: #{compact_bilinear_pool3d_forward.1} parent=11 // pred_fallthru
        _
      // Predicated region
      $region17: #{compact_bilinear_pool3d_forward.1} parent=11 // pred_check
        %p121 = pneg %p77
      $region18: #{compact_bilinear_pool3d_forward.1} parent=11 // pred_check_branch
        %123 = sbr.rel (%p121) target = $region20
      $region19: #{compact_bilinear_pool3d_forward.1} parent=11 // pred_region
        _
      $region20: #{compact_bilinear_pool3d_forward.1} parent=11 // pred_fallthru
        _
    $region12: #{compact_bilinear_pool3d_forward.1} parent=5 // pred_fallthru
      _
    %p124 = scmp.lt.s32.totalorder %s9, 7
    // Predicated region
    $region21: #{compact_bilinear_pool3d_forward.1} parent=5 // pred_check
      %p125 = pneg %p124
    $region22: #{compact_bilinear_pool3d_forward.1} parent=5 // pred_check_branch
      %127 = sbr.rel (%p125) target = $region24
    $region23: #{compact_bilinear_pool3d_forward.1} parent=5 // pred_region
      // Predicated region
      $region25: #{compact_bilinear_pool3d_forward.1} parent=23 // pred_check
        %p128 = pneg %p29
      $region26: #{compact_bilinear_pool3d_forward.1} parent=23 // pred_check_branch
        %130 = sbr.rel (%p128) target = $region28
      $region27: #{compact_bilinear_pool3d_forward.1} parent=23 // pred_region
        %s131 = smul.u32 14, %s9
        %p132 = scmp.lt.s32.totalorder %s131, 97
        %s133 = scalar_select %p132, %s131, 97
        %s134 = smul.addr %s133, 4
        %s135 = scalar_lea.vmem %s0, %s134
        %s136 = smul.u32 14, %s9
      $region28: #{compact_bilinear_pool3d_forward.1} parent=23 // pred_fallthru
        _
    $region24: #{compact_bilinear_pool3d_forward.1} parent=5 // pred_fallthru
      _
    %p137 = scmp.le.s32.totalorder 1, %s9
    %p138 = scmp.lt.s32.totalorder %s9, 8
    %p139 = pnand %p137, %p138
    %p140 = pneg %p139
    // Predicated region
    $region29: #{compact_bilinear_pool3d_forward.1} parent=5 // pred_check
      _
    $region30: #{compact_bilinear_pool3d_forward.1} parent=5 // pred_check_branch
      %142 = sbr.rel (%p139) target = $region32
    $region31: #{compact_bilinear_pool3d_forward.1} parent=5 // pred_region
      %s143 = ssub.s32 %s9, 1
      %s144 = smul.u32 14, %s14
      %p145 = scmp.lt.s32.totalorder %s144, 97
      %s146 = scalar_select %p145, %s144, 97
      %s147 = smul.addr %s146, 4
      %s148 = scalar_lea.vmem %s0, %s147
      %p149 = pneg %p35
      %p150 = pneg %p32
      %p151 = pneg %p56
      %p152 = pneg %p53
      %p153 = pneg %p77
      %p154 = pneg %p74
      %p155 = pneg %p103
      %p156 = pneg %p100
      %s157 = smul.u32 14, %s14
      %p158 = scmp.lt.s32.totalorder %s157, 97
      %s159 = scalar_select %p158, %s157, 97
      %s160 = smul.addr %s159, 4
      %s161 = scalar_lea.vmem %s3, %s160
      %s162 = smul.u32 14, %s14
      %p163 = scmp.lt.s32.totalorder %s162, 97
      %s164 = scalar_select %p163, %s162, 97
      %s165 = smul.addr %s164, 4
      %s166 = scalar_lea.vmem %s0, %s165
      %s167 = smul.u32 14, %s14
      %s168 = smul.u32 14, %s14
      %p169 = scmp.lt.s32.totalorder %s168, 97
      %s170 = scalar_select %p169, %s168, 97
      %s171 = smul.addr %s170, 4
      %s172 = scalar_lea.vmem %s3, %s171
      %s173 = smul.u32 14, %s14
      %v174 = vld [vmem:[%s166] sm:$0xf]
      %v175 = vld [vmem:[%s166 + $0x4] sm:$0xf]
      %v176 = vld [vmem:[%s166 + $0x8] sm:$0xf]
      %v177 = vld [vmem:[%s166 + $0xc] sm:$0xf]
      %v178 = vld [vmem:[%s166 + $0x10] sm:$0xf]
      %v179 = vld [vmem:[%s166 + $0x14] sm:$0xf]
      %v180 = vld [vmem:[%s166 + $0x18] sm:$0xf]
      %v181 = vld [vmem:[%s166 + $0x1c] sm:$0xf]
      %v182 = vld [vmem:[%s166 + $0x20] sm:$0xf]
      %v183 = vld [vmem:[%s166 + $0x24] sm:$0xf]
      %v184 = vld [vmem:[%s166 + $0x28] sm:$0xf]
      %v185 = vld [vmem:[%s166 + $0x2c] sm:$0xf]
      %v186 = vld [vmem:[%s166 + $0x30] sm:$0xf]
      %v187 = vld [vmem:[%s166 + $0x34] sm:$0xf]
      %v188 = vunpack.c.l.bf16 %v174
      %v189 = vunpack.c.l.bf16 %v175
      %v190 = vunpack.c.l.bf16 %v176
      %v191 = vunpack.c.l.bf16 %v177
      %v192 = vunpack.c.l.bf16 %v178
      %v193 = vunpack.c.l.bf16 %v179
      %v194 = vunpack.c.l.bf16 %v180
      %v195 = vunpack.c.l.bf16 %v181
      %v196 = vunpack.c.l.bf16 %v182
      %v197 = vunpack.c.l.bf16 %v183
      %v198 = vunpack.c.l.bf16 %v184
      %v199 = vunpack.c.l.bf16 %v185
      %v200 = vunpack.c.l.bf16 %v186
      %v201 = vunpack.c.l.bf16 %v187
      %v202 = vmax.f32 %v188, 0.0
      %v203 = vmax.f32 %v189, 0.0
      %v204 = vmax.f32 %v190, 0.0
      %v205 = vmax.f32 %v191, 0.0
      %v206 = vmax.f32 %v192, 0.0
      %v207 = vmax.f32 %v193, 0.0
      %v208 = vmax.f32 %v194, 0.0
      %v209 = vmax.f32 %v195, 0.0
      %v210 = vmax.f32 %v196, 0.0
      %v211 = vmax.f32 %v197, 0.0
      %v212 = vmax.f32 %v198, 0.0
      %v213 = vmax.f32 %v199, 0.0
      %v214 = vmax.f32 %v200, 0.0
      %v215 = vmax.f32 %v201, 0.0
      %v216 = vpack.c.bf16 %v203, %v202
      %v217 = vpack.c.bf16 %v205, %v204
      %v218 = vpack.c.bf16 %v207, %v206
      %v219 = vpack.c.bf16 %v209, %v208
      %v220 = vpack.c.bf16 %v211, %v210
      %v221 = vpack.c.bf16 %v213, %v212
      %v222 = vpack.c.bf16 %v215, %v214
      %v223 = vld [vmem:[%s1] sm:$0xff]
      %v224 = vld [vmem:[%s1 + $0x8] sm:$0xff]
      %v225 = vld [vmem:[%s1 + $0x10] sm:$0xff]
      %v226 = vld [vmem:[%s1 + $0x18] sm:$0xff]
      %v227 = vld [vmem:[%s1 + $0x20] sm:$0xff]
      %v228 = vld [vmem:[%s1 + $0x28] sm:$0xff]
      %v229 = vld [vmem:[%s1 + $0x30] sm:$0xff]
      %v230 = vld [vmem:[%s1 + $0x38] sm:$0xff]
      %v231 = vld [vmem:[%s1 + $0x40] sm:$0xff]
      %v232 = vld [vmem:[%s1 + $0x48] sm:$0xff]
      %v233 = vld [vmem:[%s1 + $0x50] sm:$0xff]
      %v234 = vld [vmem:[%s1 + $0x58] sm:$0xff]
      %v235 = vld [vmem:[%s1 + $0x60] sm:$0xff]
      %v236 = vld [vmem:[%s1 + $0x68] sm:$0xff]
      %v237 = vld [vmem:[%s1 + $0x70] sm:$0xff]
      %v238 = vld [vmem:[%s1 + $0x78] sm:$0xff]
      %v239 = vld [vmem:[%s1 + $0x80] sm:$0xff]
      %v240 = vld [vmem:[%s1 + $0x88] sm:$0xff]
      %v241 = vld [vmem:[%s1 + $0x90] sm:$0xff]
      %v242 = vld [vmem:[%s1 + $0x98] sm:$0xff]
      %v243 = vld [vmem:[%s1 + $0xa0] sm:$0xff]
      %v244 = vld [vmem:[%s1 + $0xa8] sm:$0xff]
      %v245 = vld [vmem:[%s1 + $0xb0] sm:$0xff]
      %v246 = vld [vmem:[%s1 + $0xb8] sm:$0xff]
      %v247 = vld [vmem:[%s1 + $0xc0] sm:$0xff]
      %v248 = vld [vmem:[%s1 + $0xc8] sm:$0xff]
      %v249 = vld [vmem:[%s1 + $0xd0] sm:$0xff]
      %v250 = vld [vmem:[%s1 + $0xd8] sm:$0xff]
      %v251 = vld [vmem:[%s1 + $0xe0] sm:$0xff]
      %v252 = vld [vmem:[%s1 + $0xe8] sm:$0xff]
      %v253 = vld [vmem:[%s1 + $0xf0] sm:$0xff]
      %v254 = vld [vmem:[%s1 + $0xf8] sm:$0xff]
      %v287 = vunpack.c.l.b16 %v223
      %v288 = vunpack.c.h.b16 %v223
      %v289 = vunpack.c.l.b16 %v224
      %v290 = vunpack.c.h.b16 %v224
      %v291 = vunpack.c.l.b16 %v225
      %v292 = vunpack.c.h.b16 %v225
      %v293 = vunpack.c.l.b16 %v226
      %v294 = vunpack.c.h.b16 %v226
      %v295 = vunpack.c.l.b16 %v227
      %v296 = vunpack.c.h.b16 %v227
      %v297 = vunpack.c.l.b16 %v228
      %v298 = vunpack.c.h.b16 %v228
      %v299 = vunpack.c.l.b16 %v229
      %v300 = vunpack.c.h.b16 %v229
      %v301 = vunpack.c.l.b16 %v230
      %v302 = vunpack.c.h.b16 %v230
      %v303 = vunpack.c.l.b16 %v231
      %v304 = vunpack.c.h.b16 %v231
      %v305 = vunpack.c.l.b16 %v232
      %v306 = vunpack.c.h.b16 %v232
      %v307 = vunpack.c.l.b16 %v233
      %v308 = vunpack.c.h.b16 %v233
      %v309 = vunpack.c.l.b16 %v234
      %v310 = vunpack.c.h.b16 %v234
      %v311 = vunpack.c.l.b16 %v235
      %v312 = vunpack.c.h.b16 %v235
      %v313 = vunpack.c.l.b16 %v236
      %v314 = vunpack.c.h.b16 %v236
      %v315 = vunpack.c.l.b16 %v237
      %v316 = vunpack.c.h.b16 %v237
      %v317 = vunpack.c.l.b16 %v238
      %v318 = vunpack.c.h.b16 %v238
      %v319 = vunpack.c.l.b16 %v239
      %v320 = vunpack.c.h.b16 %v239
      %v321 = vunpack.c.l.b16 %v240
      %v322 = vunpack.c.h.b16 %v240
      %v323 = vunpack.c.l.b16 %v241
      %v324 = vunpack.c.h.b16 %v241
      %v325 = vunpack.c.l.b16 %v242
      %v326 = vunpack.c.h.b16 %v242
      %v327 = vunpack.c.l.b16 %v243
      %v328 = vunpack.c.h.b16 %v243
      %v329 = vunpack.c.l.b16 %v244
      %v330 = vunpack.c.h.b16 %v244
      %v331 = vunpack.c.l.b16 %v245
      %v332 = vunpack.c.h.b16 %v245
      %v333 = vunpack.c.l.b16 %v246
      %v334 = vunpack.c.h.b16 %v246
      %v335 = vunpack.c.l.b16 %v247
      %v336 = vunpack.c.h.b16 %v247
      %v337 = vunpack.c.l.b16 %v248
      %v338 = vunpack.c.h.b16 %v248
      %v339 = vunpack.c.l.b16 %v249
      %v340 = vunpack.c.h.b16 %v249
      %v341 = vunpack.c.l.b16 %v250
      %v342 = vunpack.c.h.b16 %v250
      %v343 = vunpack.c.l.b16 %v251
      %v344 = vunpack.c.h.b16 %v251
      %v345 = vunpack.c.l.b16 %v252
      %v346 = vunpack.c.h.b16 %v252
      %v347 = vunpack.c.l.b16 %v253
      %v348 = vunpack.c.h.b16 %v253
      %v349 = vunpack.c.l.b16 %v254
      %v350 = vunpack.c.h.b16 %v254
      %v351 = vpack.c.b16 %v291, %v287
      %v352 = vpack.c.b16 %v292, %v288
      %v353 = vpack.c.b16 %v293, %v289
      %v354 = vpack.c.b16 %v294, %v290
      %v355 = vpack.c.b16 %v299, %v295
      %v356 = vpack.c.b16 %v300, %v296
      %v357 = vpack.c.b16 %v301, %v297
      %v358 = vpack.c.b16 %v302, %v298
      %v359 = vpack.c.b16 %v307, %v303
      %v360 = vpack.c.b16 %v308, %v304
      %v361 = vpack.c.b16 %v309, %v305
      %v362 = vpack.c.b16 %v310, %v306
      %v363 = vpack.c.b16 %v315, %v311
      %v364 = vpack.c.b16 %v316, %v312
      %v365 = vpack.c.b16 %v317, %v313
      %v366 = vpack.c.b16 %v318, %v314
      %v367 = vpack.c.b16 %v323, %v319
      %v368 = vpack.c.b16 %v324, %v320
      %v369 = vpack.c.b16 %v325, %v321
      %v370 = vpack.c.b16 %v326, %v322
      %v371 = vpack.c.b16 %v331, %v327
      %v372 = vpack.c.b16 %v332, %v328
      %v373 = vpack.c.b16 %v333, %v329
      %v374 = vpack.c.b16 %v334, %v330
      %v375 = vpack.c.b16 %v339, %v335
      %v376 = vpack.c.b16 %v340, %v336
      %v377 = vpack.c.b16 %v341, %v337
      %v378 = vpack.c.b16 %v342, %v338
      %v379 = vpack.c.b16 %v347, %v343
      %v380 = vpack.c.b16 %v348, %v344
      %v381 = vpack.c.b16 %v349, %v345
      %v382 = vpack.c.b16 %v350, %v346
      %415 = vmatpush.bf16.msra.mxu0 %v379
      %416 = vmatpush.bf16.msra.mxu0 %v375
      %417 = vmatpush.bf16.msra.mxu0 %v371
      %418 = vmatpush.bf16.msra.mxu0 %v367
      %419 = vmatpush.bf16.msra.mxu0 %v363
      %420 = vmatpush.bf16.msra.mxu0 %v359
      %421 = vmatpush.bf16.msra.mxu0 %v355
      %422 = vmatpush.bf16.msra.mxu0 %v351
      %423 = vmatmul.bf16.gmra.mxu0 %v216
      %v424 = vpop.f32.mrf.mxu0
      %v425 = vadd.f32 0.0, %v424
      %v426 = vpop.f32.mrf.mxu0
      %v427 = vadd.f32 0.0, %v426
      %428 = vmatmul.bf16.gmra.mxu0 %v217
      %v429 = vpop.f32.mrf.mxu0
      %v430 = vadd.f32 0.0, %v429
      %v431 = vpop.f32.mrf.mxu0
      %v432 = vadd.f32 0.0, %v431
      %433 = vmatmul.bf16.gmra.mxu0 %v218
      %v434 = vpop.f32.mrf.mxu0
      %v435 = vadd.f32 0.0, %v434
      %v436 = vpop.f32.mrf.mxu0
      %v437 = vadd.f32 0.0, %v436
      %438 = vmatmul.bf16.gmra.mxu0 %v219
      %v439 = vpop.f32.mrf.mxu0
      %v440 = vadd.f32 0.0, %v439
      %v441 = vpop.f32.mrf.mxu0
      %v442 = vadd.f32 0.0, %v441
      %443 = vmatmul.bf16.gmra.mxu0 %v220
      %v444 = vpop.f32.mrf.mxu0
      %v445 = vadd.f32 0.0, %v444
      %v446 = vpop.f32.mrf.mxu0
      %v447 = vadd.f32 0.0, %v446
      %448 = vmatmul.bf16.gmra.mxu0 %v221
      %v449 = vpop.f32.mrf.mxu0
      %v450 = vadd.f32 0.0, %v449
      %v451 = vpop.f32.mrf.mxu0
      %v452 = vadd.f32 0.0, %v451
      %453 = vmatmul.bf16.gmra.mxu0 %v222
      %v454 = vpop.f32.mrf.mxu0
      %v455 = vadd.f32 0.0, %v454
      %v456 = vpop.f32.mrf.mxu0
      %v457 = vadd.f32 0.0, %v456
      %458 = vdwg.mxu0
      %459 = vmatpush.bf16.msra.mxu0 %v380
      %460 = vmatpush.bf16.msra.mxu0 %v376
      %461 = vmatpush.bf16.msra.mxu0 %v372
      %462 = vmatpush.bf16.msra.mxu0 %v368
      %463 = vmatpush.bf16.msra.mxu0 %v364
      %464 = vmatpush.bf16.msra.mxu0 %v360
      %465 = vmatpush.bf16.msra.mxu0 %v356
      %466 = vmatpush.bf16.msra.mxu0 %v352
      %467 = vmatmul.bf16.gmra.mxu0 %v216
      %v468 = vpop.f32.mrf.mxu0
      %v469 = vadd.f32 0.0, %v468
      %v470 = vpop.f32.mrf.mxu0
      %v471 = vadd.f32 0.0, %v470
      %472 = vmatmul.bf16.gmra.mxu0 %v217
      %v473 = vpop.f32.mrf.mxu0
      %v474 = vadd.f32 0.0, %v473
      %v475 = vpop.f32.mrf.mxu0
      %v476 = vadd.f32 0.0, %v475
      %477 = vmatmul.bf16.gmra.mxu0 %v218
      %v478 = vpop.f32.mrf.mxu0
      %v479 = vadd.f32 0.0, %v478
      %v480 = vpop.f32.mrf.mxu0
      %v481 = vadd.f32 0.0, %v480
      %482 = vmatmul.bf16.gmra.mxu0 %v219
      %v483 = vpop.f32.mrf.mxu0
      %v484 = vadd.f32 0.0, %v483
      %v485 = vpop.f32.mrf.mxu0
      %v486 = vadd.f32 0.0, %v485
      %487 = vmatmul.bf16.gmra.mxu0 %v220
      %v488 = vpop.f32.mrf.mxu0
      %v489 = vadd.f32 0.0, %v488
      %v490 = vpop.f32.mrf.mxu0
      %v491 = vadd.f32 0.0, %v490
      %492 = vmatmul.bf16.gmra.mxu0 %v221
      %v493 = vpop.f32.mrf.mxu0
      %v494 = vadd.f32 0.0, %v493
      %v495 = vpop.f32.mrf.mxu0
      %v496 = vadd.f32 0.0, %v495
      %497 = vmatmul.bf16.gmra.mxu0 %v222
      %v498 = vpop.f32.mrf.mxu0
      %v499 = vadd.f32 0.0, %v498
      %v500 = vpop.f32.mrf.mxu0
      %v501 = vadd.f32 0.0, %v500
      %502 = vdwg.mxu0
      %503 = vmatpush.bf16.msra.mxu0 %v381
      %504 = vmatpush.bf16.msra.mxu0 %v377
      %505 = vmatpush.bf16.msra.mxu0 %v373
      %506 = vmatpush.bf16.msra.mxu0 %v369
      %507 = vmatpush.bf16.msra.mxu0 %v365
      %508 = vmatpush.bf16.msra.mxu0 %v361
      %509 = vmatpush.bf16.msra.mxu0 %v357
      %510 = vmatpush.bf16.msra.mxu0 %v353
      %511 = vmatmul.bf16.gmra.mxu0 %v216
      %v512 = vpop.f32.mrf.mxu0
      %v513 = vadd.f32 0.0, %v512
      %v514 = vpop.f32.mrf.mxu0
      %v515 = vadd.f32 0.0, %v514
      %516 = vmatmul.bf16.gmra.mxu0 %v217
      %v517 = vpop.f32.mrf.mxu0
      %v518 = vadd.f32 0.0, %v517
      %v519 = vpop.f32.mrf.mxu0
      %v520 = vadd.f32 0.0, %v519
      %521 = vmatmul.bf16.gmra.mxu0 %v218
      %v522 = vpop.f32.mrf.mxu0
      %v523 = vadd.f32 0.0, %v522
      %v524 = vpop.f32.mrf.mxu0
      %v525 = vadd.f32 0.0, %v524
      %526 = vmatmul.bf16.gmra.mxu0 %v219
      %v527 = vpop.f32.mrf.mxu0
      %v528 = vadd.f32 0.0, %v527
      %v529 = vpop.f32.mrf.mxu0
      %v530 = vadd.f32 0.0, %v529
      %531 = vmatmul.bf16.gmra.mxu0 %v220
      %v532 = vpop.f32.mrf.mxu0
      %v533 = vadd.f32 0.0, %v532
      %v534 = vpop.f32.mrf.mxu0
      %v535 = vadd.f32 0.0, %v534
      %536 = vmatmul.bf16.gmra.mxu0 %v221
      %v537 = vpop.f32.mrf.mxu0
      %v538 = vadd.f32 0.0, %v537
      %v539 = vpop.f32.mrf.mxu0
      %v540 = vadd.f32 0.0, %v539
      %541 = vmatmul.bf16.gmra.mxu0 %v222
      %v542 = vpop.f32.mrf.mxu0
      %v543 = vadd.f32 0.0, %v542
      %v544 = vpop.f32.mrf.mxu0
      %v545 = vadd.f32 0.0, %v544
      %546 = vdwg.mxu0
      %547 = vmatpush.bf16.msra.mxu0 %v382
      %548 = vmatpush.bf16.msra.mxu0 %v378
      %549 = vmatpush.bf16.msra.mxu0 %v374
      %550 = vmatpush.bf16.msra.mxu0 %v370
      %551 = vmatpush.bf16.msra.mxu0 %v366
      %552 = vmatpush.bf16.msra.mxu0 %v362
      %553 = vmatpush.bf16.msra.mxu0 %v358
      %554 = vmatpush.bf16.msra.mxu0 %v354
      %555 = vmatmul.bf16.gmra.mxu0 %v216
      %v556 = vpop.f32.mrf.mxu0
      %v557 = vadd.f32 0.0, %v556
      %v558 = vpop.f32.mrf.mxu0
      %v559 = vadd.f32 0.0, %v558
      %560 = vmatmul.bf16.gmra.mxu0 %v217
      %v561 = vpop.f32.mrf.mxu0
      %v562 = vadd.f32 0.0, %v561
      %v563 = vpop.f32.mrf.mxu0
      %v564 = vadd.f32 0.0, %v563
      %565 = vmatmul.bf16.gmra.mxu0 %v218
      %v566 = vpop.f32.mrf.mxu0
      %v567 = vadd.f32 0.0, %v566
      %v568 = vpop.f32.mrf.mxu0
      %v569 = vadd.f32 0.0, %v568
      %570 = vmatmul.bf16.gmra.mxu0 %v219
      %v571 = vpop.f32.mrf.mxu0
      %v572 = vadd.f32 0.0, %v571
      %v573 = vpop.f32.mrf.mxu0
      %v574 = vadd.f32 0.0, %v573
      %575 = vmatmul.bf16.gmra.mxu0 %v220
      %v576 = vpop.f32.mrf.mxu0
      %v577 = vadd.f32 0.0, %v576
      %v578 = vpop.f32.mrf.mxu0
      %v579 = vadd.f32 0.0, %v578
      %580 = vmatmul.bf16.gmra.mxu0 %v221
      %v581 = vpop.f32.mrf.mxu0
      %v582 = vadd.f32 0.0, %v581
      %v583 = vpop.f32.mrf.mxu0
      %v584 = vadd.f32 0.0, %v583
      %585 = vmatmul.bf16.gmra.mxu0 %v222
      %v586 = vpop.f32.mrf.mxu0
      %v587 = vadd.f32 0.0, %v586
      %v588 = vpop.f32.mrf.mxu0
      %v589 = vadd.f32 0.0, %v588
      %590 = vdwg.mxu0
      %v591 = vmul.f32 %v425, %v513
      %v592 = vmul.f32 %v427, %v515
      %v593 = vmul.f32 %v430, %v518
      %v594 = vmul.f32 %v432, %v520
      %v595 = vmul.f32 %v435, %v523
      %v596 = vmul.f32 %v437, %v525
      %v597 = vmul.f32 %v440, %v528
      %v598 = vmul.f32 %v442, %v530
      %v599 = vmul.f32 %v445, %v533
      %v600 = vmul.f32 %v447, %v535
      %v601 = vmul.f32 %v450, %v538
      %v602 = vmul.f32 %v452, %v540
      %v603 = vmul.f32 %v455, %v543
      %v604 = vmul.f32 %v457, %v545
      %v605 = vmul.f32 %v469, %v557
      %v606 = vmul.f32 %v471, %v559
      %v607 = vmul.f32 %v474, %v562
      %v608 = vmul.f32 %v476, %v564
      %v609 = vmul.f32 %v479, %v567
      %v610 = vmul.f32 %v481, %v569
      %v611 = vmul.f32 %v484, %v572
      %v612 = vmul.f32 %v486, %v574
      %v613 = vmul.f32 %v489, %v577
      %v614 = vmul.f32 %v491, %v579
      %v615 = vmul.f32 %v494, %v582
      %v616 = vmul.f32 %v496, %v584
      %v617 = vmul.f32 %v499, %v587
      %v618 = vmul.f32 %v501, %v589
      %v619 = vsub.f32 %v591, %v605
      %v620 = vsub.f32 %v592, %v606
      %v621 = vsub.f32 %v593, %v607
      %v622 = vsub.f32 %v594, %v608
      %v623 = vsub.f32 %v595, %v609
      %v624 = vsub.f32 %v596, %v610
      %v625 = vsub.f32 %v597, %v611
      %v626 = vsub.f32 %v598, %v612
      %v627 = vsub.f32 %v599, %v613
      %v628 = vsub.f32 %v600, %v614
      %v629 = vsub.f32 %v601, %v615
      %v630 = vsub.f32 %v602, %v616
      %v631 = vsub.f32 %v603, %v617
      %v632 = vsub.f32 %v604, %v618
      %v633 = vmul.f32 %v425, %v557
      %v634 = vmul.f32 %v427, %v559
      %v635 = vmul.f32 %v430, %v562
      %v636 = vmul.f32 %v432, %v564
      %v637 = vmul.f32 %v435, %v567
      %v638 = vmul.f32 %v437, %v569
      %v639 = vmul.f32 %v440, %v572
      %v640 = vmul.f32 %v442, %v574
      %v641 = vmul.f32 %v445, %v577
      %v642 = vmul.f32 %v447, %v579
      %v643 = vmul.f32 %v450, %v582
      %v644 = vmul.f32 %v452, %v584
      %v645 = vmul.f32 %v455, %v587
      %v646 = vmul.f32 %v457, %v589
      %v647 = vmul.f32 %v513, %v469
      %v648 = vmul.f32 %v515, %v471
      %v649 = vmul.f32 %v518, %v474
      %v650 = vmul.f32 %v520, %v476
      %v651 = vmul.f32 %v523, %v479
      %v652 = vmul.f32 %v525, %v481
      %v653 = vmul.f32 %v528, %v484
      %v654 = vmul.f32 %v530, %v486
      %v655 = vmul.f32 %v533, %v489
      %v656 = vmul.f32 %v535, %v491
      %v657 = vmul.f32 %v538, %v494
      %v658 = vmul.f32 %v540, %v496
      %v659 = vmul.f32 %v543, %v499
      %v660 = vmul.f32 %v545, %v501
      %v661 = vadd.f32 %v633, %v647
      %v662 = vadd.f32 %v634, %v648
      %v663 = vadd.f32 %v635, %v649
      %v664 = vadd.f32 %v636, %v650
      %v665 = vadd.f32 %v637, %v651
      %v666 = vadd.f32 %v638, %v652
      %v667 = vadd.f32 %v639, %v653
      %v668 = vadd.f32 %v640, %v654
      %v669 = vadd.f32 %v641, %v655
      %v670 = vadd.f32 %v642, %v656
      %v671 = vadd.f32 %v643, %v657
      %v672 = vadd.f32 %v644, %v658
      %v673 = vadd.f32 %v645, %v659
      %v674 = vadd.f32 %v646, %v660
      %v675 = vpack.c.bf16 %v619, %v619
      %v676 = vpack.c.bf16 %v620, %v620
      %v677 = vpack.c.bf16 %v621, %v621
      %v678 = vpack.c.bf16 %v622, %v622
      %v679 = vpack.c.bf16 %v623, %v623
      %v680 = vpack.c.bf16 %v624, %v624
      %v681 = vpack.c.bf16 %v625, %v625
      %v682 = vpack.c.bf16 %v626, %v626
      %v683 = vpack.c.bf16 %v627, %v627
      %v684 = vpack.c.bf16 %v628, %v628
      %v685 = vpack.c.bf16 %v629, %v629
      %v686 = vpack.c.bf16 %v630, %v630
      %v687 = vpack.c.bf16 %v631, %v631
      %v688 = vpack.c.bf16 %v632, %v632
      %v689 = vpack.c.bf16 %v661, %v661
      %v690 = vpack.c.bf16 %v662, %v662
      %v691 = vpack.c.bf16 %v663, %v663
      %v692 = vpack.c.bf16 %v664, %v664
      %v693 = vpack.c.bf16 %v665, %v665
      %v694 = vpack.c.bf16 %v666, %v666
      %v695 = vpack.c.bf16 %v667, %v667
      %v696 = vpack.c.bf16 %v668, %v668
      %v697 = vpack.c.bf16 %v669, %v669
      %v698 = vpack.c.bf16 %v670, %v670
      %v699 = vpack.c.bf16 %v671, %v671
      %v700 = vpack.c.bf16 %v672, %v672
      %v701 = vpack.c.bf16 %v673, %v673
      %v702 = vpack.c.bf16 %v674, %v674
      %v717 = vunpack.c.l.b16 %v675
      %v718 = vunpack.c.l.b16 %v676
      %v719 = vunpack.c.l.b16 %v677
      %v720 = vunpack.c.l.b16 %v678
      %v721 = vunpack.c.l.b16 %v679
      %v722 = vunpack.c.l.b16 %v680
      %v723 = vunpack.c.l.b16 %v681
      %v724 = vunpack.c.l.b16 %v682
      %v725 = vunpack.c.l.b16 %v683
      %v726 = vunpack.c.l.b16 %v684
      %v727 = vunpack.c.l.b16 %v685
      %v728 = vunpack.c.l.b16 %v686
      %v729 = vunpack.c.l.b16 %v687
      %v730 = vunpack.c.l.b16 %v688
      %v731 = vpack.c.b16 %v718, %v717
      %v732 = vpack.c.b16 %v720, %v719
      %v733 = vpack.c.b16 %v722, %v721
      %v734 = vpack.c.b16 %v724, %v723
      %v735 = vpack.c.b16 %v726, %v725
      %v736 = vpack.c.b16 %v728, %v727
      %v737 = vpack.c.b16 %v730, %v729
      %v759 = vunpack.c.l.b16 %v689
      %v760 = vunpack.c.l.b16 %v690
      %v761 = vunpack.c.l.b16 %v691
      %v762 = vunpack.c.l.b16 %v692
      %v763 = vunpack.c.l.b16 %v693
      %v764 = vunpack.c.l.b16 %v694
      %v765 = vunpack.c.l.b16 %v695
      %v766 = vunpack.c.l.b16 %v696
      %v767 = vunpack.c.l.b16 %v697
      %v768 = vunpack.c.l.b16 %v698
      %v769 = vunpack.c.l.b16 %v699
      %v770 = vunpack.c.l.b16 %v700
      %v771 = vunpack.c.l.b16 %v701
      %v772 = vunpack.c.l.b16 %v702
      %v773 = vpack.c.b16 %v760, %v759
      %v774 = vpack.c.b16 %v762, %v761
      %v775 = vpack.c.b16 %v764, %v763
      %v776 = vpack.c.b16 %v766, %v765
      %v777 = vpack.c.b16 %v768, %v767
      %v778 = vpack.c.b16 %v770, %v769
      %v779 = vpack.c.b16 %v772, %v771
      %v787 = vld [vmem:[%s2] sm:$0xf]
      %v788 = vld [vmem:[%s2 + $0x4] sm:$0xf]
      %v789 = vld [vmem:[%s2 + $0x8] sm:$0xf]
      %v790 = vld [vmem:[%s2 + $0xc] sm:$0xf]
      %v791 = vld [vmem:[%s2 + $0x10] sm:$0xf]
      %v792 = vld [vmem:[%s2 + $0x14] sm:$0xf]
      %v793 = vld [vmem:[%s2 + $0x18] sm:$0xf]
      %v794 = vld [vmem:[%s2 + $0x1c] sm:$0xf]
      %v795 = vld [vmem:[%s2 + $0x20] sm:$0xf]
      %v796 = vld [vmem:[%s2 + $0x24] sm:$0xf]
      %v797 = vld [vmem:[%s2 + $0x28] sm:$0xf]
      %v798 = vld [vmem:[%s2 + $0x2c] sm:$0xf]
      %v799 = vld [vmem:[%s2 + $0x30] sm:$0xf]
      %v800 = vld [vmem:[%s2 + $0x34] sm:$0xf]
      %v801 = vld [vmem:[%s2 + $0x38] sm:$0xf]
      %v802 = vld [vmem:[%s2 + $0x3c] sm:$0xf]
      %v803 = vld [vmem:[%s2 + $0x40] sm:$0xf]
      %v804 = vld [vmem:[%s2 + $0x44] sm:$0xf]
      %v805 = vld [vmem:[%s2 + $0x48] sm:$0xf]
      %v806 = vld [vmem:[%s2 + $0x4c] sm:$0xf]
      %v807 = vld [vmem:[%s2 + $0x50] sm:$0xf]
      %v808 = vld [vmem:[%s2 + $0x54] sm:$0xf]
      %v809 = vld [vmem:[%s2 + $0x58] sm:$0xf]
      %v810 = vld [vmem:[%s2 + $0x5c] sm:$0xf]
      %v811 = vld [vmem:[%s2 + $0x60] sm:$0xf]
      %v812 = vld [vmem:[%s2 + $0x64] sm:$0xf]
      %v813 = vld [vmem:[%s2 + $0x68] sm:$0xf]
      %v814 = vld [vmem:[%s2 + $0x6c] sm:$0xf]
      %v815 = vld [vmem:[%s2 + $0x70] sm:$0xf]
      %v816 = vld [vmem:[%s2 + $0x74] sm:$0xf]
      %v817 = vld [vmem:[%s2 + $0x78] sm:$0xf]
      %v818 = vld [vmem:[%s2 + $0x7c] sm:$0xf]
      %v851 = vunpack.c.l.b16 %v787
      %v852 = vunpack.c.l.b16 %v788
      %v853 = vunpack.c.l.b16 %v789
      %v854 = vunpack.c.l.b16 %v790
      %v855 = vunpack.c.l.b16 %v791
      %v856 = vunpack.c.l.b16 %v792
      %v857 = vunpack.c.l.b16 %v793
      %v858 = vunpack.c.l.b16 %v794
      %v859 = vunpack.c.l.b16 %v795
      %v860 = vunpack.c.l.b16 %v796
      %v861 = vunpack.c.l.b16 %v797
      %v862 = vunpack.c.l.b16 %v798
      %v863 = vunpack.c.l.b16 %v799
      %v864 = vunpack.c.l.b16 %v800
      %v865 = vunpack.c.l.b16 %v801
      %v866 = vunpack.c.l.b16 %v802
      %v867 = vunpack.c.l.b16 %v803
      %v868 = vunpack.c.l.b16 %v804
      %v869 = vunpack.c.l.b16 %v805
      %v870 = vunpack.c.l.b16 %v806
      %v871 = vunpack.c.l.b16 %v807
      %v872 = vunpack.c.l.b16 %v808
      %v873 = vunpack.c.l.b16 %v809
      %v874 = vunpack.c.l.b16 %v810
      %v875 = vunpack.c.l.b16 %v811
      %v876 = vunpack.c.l.b16 %v812
      %v877 = vunpack.c.l.b16 %v813
      %v878 = vunpack.c.l.b16 %v814
      %v879 = vunpack.c.l.b16 %v815
      %v880 = vunpack.c.l.b16 %v816
      %v881 = vunpack.c.l.b16 %v817
      %v882 = vunpack.c.l.b16 %v818
      %v883 = vpack.c.b16 %v852, %v851
      %v884 = vpack.c.b16 %v854, %v853
      %v885 = vpack.c.b16 %v856, %v855
      %v886 = vpack.c.b16 %v858, %v857
      %v887 = vpack.c.b16 %v860, %v859
      %v888 = vpack.c.b16 %v862, %v861
      %v889 = vpack.c.b16 %v864, %v863
      %v890 = vpack.c.b16 %v866, %v865
      %v891 = vpack.c.b16 %v868, %v867
      %v892 = vpack.c.b16 %v870, %v869
      %v893 = vpack.c.b16 %v872, %v871
      %v894 = vpack.c.b16 %v874, %v873
      %v895 = vpack.c.b16 %v876, %v875
      %v896 = vpack.c.b16 %v878, %v877
      %v897 = vpack.c.b16 %v880, %v879
      %v898 = vpack.c.b16 %v882, %v881
      %915 = vmatpush.bf16.msra.mxu0 %v890
      %916 = vmatpush.bf16.msra.mxu0 %v889
      %917 = vmatpush.bf16.msra.mxu0 %v888
      %918 = vmatpush.bf16.msra.mxu0 %v887
      %919 = vmatpush.bf16.msra.mxu0 %v886
      %920 = vmatpush.bf16.msra.mxu0 %v885
      %921 = vmatpush.bf16.msra.mxu0 %v884
      %922 = vmatpush.bf16.msra.mxu0 %v883
      %923 = vmatmul.bf16.gmra.mxu0 %v731
      %v924 = vpop.f32.mrf.mxu0
      %v925 = vadd.f32 0.0, %v924
      %v926 = vpop.f32.mrf.mxu0
      %v927 = vadd.f32 0.0, %v926
      %928 = vmatmul.bf16.gmra.mxu0 %v732
      %v929 = vpop.f32.mrf.mxu0
      %v930 = vadd.f32 0.0, %v929
      %v931 = vpop.f32.mrf.mxu0
      %v932 = vadd.f32 0.0, %v931
      %933 = vmatmul.bf16.gmra.mxu0 %v733
      %v934 = vpop.f32.mrf.mxu0
      %v935 = vadd.f32 0.0, %v934
      %v936 = vpop.f32.mrf.mxu0
      %v937 = vadd.f32 0.0, %v936
      %938 = vmatmul.bf16.gmra.mxu0 %v734
      %v939 = vpop.f32.mrf.mxu0
      %v940 = vadd.f32 0.0, %v939
      %v941 = vpop.f32.mrf.mxu0
      %v942 = vadd.f32 0.0, %v941
      %943 = vmatmul.bf16.gmra.mxu0 %v735
      %v944 = vpop.f32.mrf.mxu0
      %v945 = vadd.f32 0.0, %v944
      %v946 = vpop.f32.mrf.mxu0
      %v947 = vadd.f32 0.0, %v946
      %948 = vmatmul.bf16.gmra.mxu0 %v736
      %v949 = vpop.f32.mrf.mxu0
      %v950 = vadd.f32 0.0, %v949
      %v951 = vpop.f32.mrf.mxu0
      %v952 = vadd.f32 0.0, %v951
      %953 = vmatmul.bf16.gmra.mxu0 %v737
      %v954 = vpop.f32.mrf.mxu0
      %v955 = vadd.f32 0.0, %v954
      %v956 = vpop.f32.mrf.mxu0
      %v957 = vadd.f32 0.0, %v956
      %958 = vdwg.mxu0
      %959 = vmatpush.bf16.msra.mxu0 %v898
      %960 = vmatpush.bf16.msra.mxu0 %v897
      %961 = vmatpush.bf16.msra.mxu0 %v896
      %962 = vmatpush.bf16.msra.mxu0 %v895
      %963 = vmatpush.bf16.msra.mxu0 %v894
      %964 = vmatpush.bf16.msra.mxu0 %v893
      %965 = vmatpush.bf16.msra.mxu0 %v892
      %966 = vmatpush.bf16.msra.mxu0 %v891
      %967 = vmatmul.bf16.gmra.mxu0 %v773
      %v968 = vpop.f32.mrf.mxu0
      %v969 = vadd.f32 %v925, %v968
      %v970 = vpop.f32.mrf.mxu0
      %v971 = vadd.f32 %v927, %v970
      %972 = vmatmul.bf16.gmra.mxu0 %v774
      %v973 = vpop.f32.mrf.mxu0
      %v974 = vadd.f32 %v930, %v973
      %v975 = vpop.f32.mrf.mxu0
      %v976 = vadd.f32 %v932, %v975
      %977 = vmatmul.bf16.gmra.mxu0 %v775
      %v978 = vpop.f32.mrf.mxu0
      %v979 = vadd.f32 %v935, %v978
      %v980 = vpop.f32.mrf.mxu0
      %v981 = vadd.f32 %v937, %v980
      %982 = vmatmul.bf16.gmra.mxu0 %v776
      %v983 = vpop.f32.mrf.mxu0
      %v984 = vadd.f32 %v940, %v983
      %v985 = vpop.f32.mrf.mxu0
      %v986 = vadd.f32 %v942, %v985
      %987 = vmatmul.bf16.gmra.mxu0 %v777
      %v988 = vpop.f32.mrf.mxu0
      %v989 = vadd.f32 %v945, %v988
      %v990 = vpop.f32.mrf.mxu0
      %v991 = vadd.f32 %v947, %v990
      %992 = vmatmul.bf16.gmra.mxu0 %v778
      %v993 = vpop.f32.mrf.mxu0
      %v994 = vadd.f32 %v950, %v993
      %v995 = vpop.f32.mrf.mxu0
      %v996 = vadd.f32 %v952, %v995
      %997 = vmatmul.bf16.gmra.mxu0 %v779
      %v998 = vpop.f32.mrf.mxu0
      %v999 = vadd.f32 %v955, %v998
      %v1000 = vpop.f32.mrf.mxu0
      %v1001 = vadd.f32 %v957, %v1000
      %1002 = vdwg.mxu0
      %v1003 = vmul.f32 %v969, %v969
      %v1004 = vmul.f32 %v971, %v971
      %v1005 = vmul.f32 %v974, %v974
      %v1006 = vmul.f32 %v976, %v976
      %v1007 = vmul.f32 %v979, %v979
      %v1008 = vmul.f32 %v981, %v981
      %v1009 = vmul.f32 %v984, %v984
      %v1010 = vmul.f32 %v986, %v986
      %v1011 = vmul.f32 %v989, %v989
      %v1012 = vmul.f32 %v991, %v991
      %v1013 = vmul.f32 %v994, %v994
      %v1014 = vmul.f32 %v996, %v996
      %v1015 = vmul.f32 %v999, %v999
      %v1016 = vmul.f32 %v1001, %v1001
      %1017 = vadd.xlane.f32.xlu0 %v1003
      %v1018 = vpop.xlane.xlu0 %1017
      %1019 = vadd.xlane.f32.xlu0 %v1004
      %v1020 = vpop.xlane.xlu0 %1019
      %1021 = vadd.xlane.f32.xlu0 %v1005
      %v1022 = vpop.xlane.xlu0 %1021
      %1023 = vadd.xlane.f32.xlu0 %v1006
      %v1024 = vpop.xlane.xlu0 %1023
      %1025 = vadd.xlane.f32.xlu0 %v1007
      %v1026 = vpop.xlane.xlu0 %1025
      %1027 = vadd.xlane.f32.xlu0 %v1008
      %v1028 = vpop.xlane.xlu0 %1027
      %1029 = vadd.xlane.f32.xlu0 %v1009
      %v1030 = vpop.xlane.xlu0 %1029
      %1031 = vadd.xlane.f32.xlu0 %v1010
      %v1032 = vpop.xlane.xlu0 %1031
      %1033 = vadd.xlane.f32.xlu0 %v1011
      %v1034 = vpop.xlane.xlu0 %1033
      %1035 = vadd.xlane.f32.xlu0 %v1012
      %v1036 = vpop.xlane.xlu0 %1035
      %1037 = vadd.xlane.f32.xlu0 %v1013
      %v1038 = vpop.xlane.xlu0 %1037
      %1039 = vadd.xlane.f32.xlu0 %v1014
      %v1040 = vpop.xlane.xlu0 %1039
      %1041 = vadd.xlane.f32.xlu0 %v1015
      %v1042 = vpop.xlane.xlu0 %1041
      %1043 = vadd.xlane.f32.xlu0 %v1016
      %v1044 = vpop.xlane.xlu0 %1043
      %v1045 = vmax.f32 %v1018, 1e-24
      %v1046 = vmax.f32 %v1020, 1e-24
      %v1047 = vmax.f32 %v1022, 1e-24
      %v1048 = vmax.f32 %v1024, 1e-24
      %v1049 = vmax.f32 %v1026, 1e-24
      %v1050 = vmax.f32 %v1028, 1e-24
      %v1051 = vmax.f32 %v1030, 1e-24
      %v1052 = vmax.f32 %v1032, 1e-24
      %v1053 = vmax.f32 %v1034, 1e-24
      %v1054 = vmax.f32 %v1036, 1e-24
      %v1055 = vmax.f32 %v1038, 1e-24
      %v1056 = vmax.f32 %v1040, 1e-24
      %v1057 = vmax.f32 %v1042, 1e-24
      %v1058 = vmax.f32 %v1044, 1e-24
      %v1059 = vrsqrt.pop %v1045
      %v1060 = vmul.f32 %v1059, %v1045
      %v1061 = vmul.f32 %v1060, %v1059
      %v1062 = vmul.f32 0.5, %v1061
      %v1063 = vsub.f32 1.5, %v1062
      %v1064 = vmul.f32 %v1059, %v1063
      %vm1065 = vweird.f32 %v1045
      %vm1066 = vweird.f32 %v1059
      %vm1067 = vmor %vm1065, %vm1066
      %v1068 = vsel %vm1067, %v1059, %v1064
      %v1069 = vrsqrt.pop %v1046
      %v1070 = vmul.f32 %v1069, %v1046
      %v1071 = vmul.f32 %v1070, %v1069
      %v1072 = vmul.f32 0.5, %v1071
      %v1073 = vsub.f32 1.5, %v1072
      %v1074 = vmul.f32 %v1069, %v1073
      %vm1075 = vweird.f32 %v1046
      %vm1076 = vweird.f32 %v1069
      %vm1077 = vmor %vm1075, %vm1076
      %v1078 = vsel %vm1077, %v1069, %v1074
      %v1079 = vrsqrt.pop %v1047
      %v1080 = vmul.f32 %v1079, %v1047
      %v1081 = vmul.f32 %v1080, %v1079
      %v1082 = vmul.f32 0.5, %v1081
      %v1083 = vsub.f32 1.5, %v1082
      %v1084 = vmul.f32 %v1079, %v1083
      %vm1085 = vweird.f32 %v1047
      %vm1086 = vweird.f32 %v1079
      %vm1087 = vmor %vm1085, %vm1086
      %v1088 = vsel %vm1087, %v1079, %v1084
      %v1089 = vrsqrt.pop %v1048
      %v1090 = vmul.f32 %v1089, %v1048
      %v1091 = vmul.f32 %v1090, %v1089
      %v1092 = vmul.f32 0.5, %v1091
      %v1093 = vsub.f32 1.5, %v1092
      %v1094 = vmul.f32 %v1089, %v1093
      %vm1095 = vweird.f32 %v1048
      %vm1096 = vweird.f32 %v1089
      %vm1097 = vmor %vm1095, %vm1096
      %v1098 = vsel %vm1097, %v1089, %v1094
      %v1099 = vrsqrt.pop %v1049
      %v1100 = vmul.f32 %v1099, %v1049
      %v1101 = vmul.f32 %v1100, %v1099
      %v1102 = vmul.f32 0.5, %v1101
      %v1103 = vsub.f32 1.5, %v1102
      %v1104 = vmul.f32 %v1099, %v1103
      %vm1105 = vweird.f32 %v1049
      %vm1106 = vweird.f32 %v1099
      %vm1107 = vmor %vm1105, %vm1106
      %v1108 = vsel %vm1107, %v1099, %v1104
      %v1109 = vrsqrt.pop %v1050
      %v1110 = vmul.f32 %v1109, %v1050
      %v1111 = vmul.f32 %v1110, %v1109
      %v1112 = vmul.f32 0.5, %v1111
      %v1113 = vsub.f32 1.5, %v1112
      %v1114 = vmul.f32 %v1109, %v1113
      %vm1115 = vweird.f32 %v1050
      %vm1116 = vweird.f32 %v1109
      %vm1117 = vmor %vm1115, %vm1116
      %v1118 = vsel %vm1117, %v1109, %v1114
      %v1119 = vrsqrt.pop %v1051
      %v1120 = vmul.f32 %v1119, %v1051
      %v1121 = vmul.f32 %v1120, %v1119
      %v1122 = vmul.f32 0.5, %v1121
      %v1123 = vsub.f32 1.5, %v1122
      %v1124 = vmul.f32 %v1119, %v1123
      %vm1125 = vweird.f32 %v1051
      %vm1126 = vweird.f32 %v1119
      %vm1127 = vmor %vm1125, %vm1126
      %v1128 = vsel %vm1127, %v1119, %v1124
      %v1129 = vrsqrt.pop %v1052
      %v1130 = vmul.f32 %v1129, %v1052
      %v1131 = vmul.f32 %v1130, %v1129
      %v1132 = vmul.f32 0.5, %v1131
      %v1133 = vsub.f32 1.5, %v1132
      %v1134 = vmul.f32 %v1129, %v1133
      %vm1135 = vweird.f32 %v1052
      %vm1136 = vweird.f32 %v1129
      %vm1137 = vmor %vm1135, %vm1136
      %v1138 = vsel %vm1137, %v1129, %v1134
      %v1139 = vrsqrt.pop %v1053
      %v1140 = vmul.f32 %v1139, %v1053
      %v1141 = vmul.f32 %v1140, %v1139
      %v1142 = vmul.f32 0.5, %v1141
      %v1143 = vsub.f32 1.5, %v1142
      %v1144 = vmul.f32 %v1139, %v1143
      %vm1145 = vweird.f32 %v1053
      %vm1146 = vweird.f32 %v1139
      %vm1147 = vmor %vm1145, %vm1146
      %v1148 = vsel %vm1147, %v1139, %v1144
      %v1149 = vrsqrt.pop %v1054
      %v1150 = vmul.f32 %v1149, %v1054
      %v1151 = vmul.f32 %v1150, %v1149
      %v1152 = vmul.f32 0.5, %v1151
      %v1153 = vsub.f32 1.5, %v1152
      %v1154 = vmul.f32 %v1149, %v1153
      %vm1155 = vweird.f32 %v1054
      %vm1156 = vweird.f32 %v1149
      %vm1157 = vmor %vm1155, %vm1156
      %v1158 = vsel %vm1157, %v1149, %v1154
      %v1159 = vrsqrt.pop %v1055
      %v1160 = vmul.f32 %v1159, %v1055
      %v1161 = vmul.f32 %v1160, %v1159
      %v1162 = vmul.f32 0.5, %v1161
      %v1163 = vsub.f32 1.5, %v1162
      %v1164 = vmul.f32 %v1159, %v1163
      %vm1165 = vweird.f32 %v1055
      %vm1166 = vweird.f32 %v1159
      %vm1167 = vmor %vm1165, %vm1166
      %v1168 = vsel %vm1167, %v1159, %v1164
      %v1169 = vrsqrt.pop %v1056
      %v1170 = vmul.f32 %v1169, %v1056
      %v1171 = vmul.f32 %v1170, %v1169
      %v1172 = vmul.f32 0.5, %v1171
      %v1173 = vsub.f32 1.5, %v1172
      %v1174 = vmul.f32 %v1169, %v1173
      %vm1175 = vweird.f32 %v1056
      %vm1176 = vweird.f32 %v1169
      %vm1177 = vmor %vm1175, %vm1176
      %v1178 = vsel %vm1177, %v1169, %v1174
      %v1179 = vrsqrt.pop %v1057
      %v1180 = vmul.f32 %v1179, %v1057
      %v1181 = vmul.f32 %v1180, %v1179
      %v1182 = vmul.f32 0.5, %v1181
      %v1183 = vsub.f32 1.5, %v1182
      %v1184 = vmul.f32 %v1179, %v1183
      %vm1185 = vweird.f32 %v1057
      %vm1186 = vweird.f32 %v1179
      %vm1187 = vmor %vm1185, %vm1186
      %v1188 = vsel %vm1187, %v1179, %v1184
      %v1189 = vrsqrt.pop %v1058
      %v1190 = vmul.f32 %v1189, %v1058
      %v1191 = vmul.f32 %v1190, %v1189
      %v1192 = vmul.f32 0.5, %v1191
      %v1193 = vsub.f32 1.5, %v1192
      %v1194 = vmul.f32 %v1189, %v1193
      %vm1195 = vweird.f32 %v1058
      %vm1196 = vweird.f32 %v1189
      %vm1197 = vmor %vm1195, %vm1196
      %v1198 = vsel %vm1197, %v1189, %v1194
      %v1199 = vmul.f32 %v969, %v1068
      %v1200 = vmul.f32 %v971, %v1078
      %v1201 = vmul.f32 %v974, %v1088
      %v1202 = vmul.f32 %v976, %v1098
      %v1203 = vmul.f32 %v979, %v1108
      %v1204 = vmul.f32 %v981, %v1118
      %v1205 = vmul.f32 %v984, %v1128
      %v1206 = vmul.f32 %v986, %v1138
      %v1207 = vmul.f32 %v989, %v1148
      %v1208 = vmul.f32 %v991, %v1158
      %v1209 = vmul.f32 %v994, %v1168
      %v1210 = vmul.f32 %v996, %v1178
      %v1211 = vmul.f32 %v999, %v1188
      %v1212 = vmul.f32 %v1001, %v1198
      %v1213 = vpack.c.bf16 %v1199, %v1199
      %v1214 = vpack.c.bf16 %v1200, %v1200
      %v1215 = vpack.c.bf16 %v1201, %v1201
      %v1216 = vpack.c.bf16 %v1202, %v1202
      %v1217 = vpack.c.bf16 %v1203, %v1203
      %v1218 = vpack.c.bf16 %v1204, %v1204
      %v1219 = vpack.c.bf16 %v1205, %v1205
      %v1220 = vpack.c.bf16 %v1206, %v1206
      %v1221 = vpack.c.bf16 %v1207, %v1207
      %v1222 = vpack.c.bf16 %v1208, %v1208
      %v1223 = vpack.c.bf16 %v1209, %v1209
      %v1224 = vpack.c.bf16 %v1210, %v1210
      %v1225 = vpack.c.bf16 %v1211, %v1211
      %v1226 = vpack.c.bf16 %v1212, %v1212
      %1227 = vst [vmem:[%s172] sm:$0xf] %v1213
      %1228 = vst [vmem:[%s172 + $0x4] sm:$0xf] %v1214
      %1229 = vst [vmem:[%s172 + $0x8] sm:$0xf] %v1215
      %1230 = vst [vmem:[%s172 + $0xc] sm:$0xf] %v1216
      %1231 = vst [vmem:[%s172 + $0x10] sm:$0xf] %v1217
      %1232 = vst [vmem:[%s172 + $0x14] sm:$0xf] %v1218
      %1233 = vst [vmem:[%s172 + $0x18] sm:$0xf] %v1219
      %1234 = vst [vmem:[%s172 + $0x1c] sm:$0xf] %v1220
      %1235 = vst [vmem:[%s172 + $0x20] sm:$0xf] %v1221
      %1236 = vst [vmem:[%s172 + $0x24] sm:$0xf] %v1222
      %1237 = vst [vmem:[%s172 + $0x28] sm:$0xf] %v1223
      %1238 = vst [vmem:[%s172 + $0x2c] sm:$0xf] %v1224
      %1239 = vst [vmem:[%s172 + $0x30] sm:$0xf] %v1225
      %1240 = vst [vmem:[%s172 + $0x34] sm:$0xf] %v1226
      %s1241 = smul.u32 14, %s14
      %p1242 = scmp.lt.s32.totalorder %s1241, 97
      %s1243 = scalar_select %p1242, %s1241, 97
      %s1244 = smul.addr %s1243, 4
      %s1245 = scalar_lea.vmem %s3, %s1244
      // Predicated region
      $region33: #{compact_bilinear_pool3d_forward.1} parent=31 // pred_check
        %p1246 = pneg %p100
      $region34: #{compact_bilinear_pool3d_forward.1} parent=31 // pred_check_branch
        %1248 = sbr.rel (%p1246) target = $region36
      $region35: #{compact_bilinear_pool3d_forward.1} parent=31 // pred_region
        %s1249 = smul.u32 14, %s14
      $region36: #{compact_bilinear_pool3d_forward.1} parent=31 // pred_fallthru
        _
    $region32: #{compact_bilinear_pool3d_forward.1} parent=5 // pred_fallthru
      _
    %p1250 = scmp.le.s32.totalorder 2, %s9
    // Predicated region
    $region37: #{compact_bilinear_pool3d_forward.1} parent=5 // pred_check
      %p1251 = pneg %p1250
    $region38: #{compact_bilinear_pool3d_forward.1} parent=5 // pred_check_branch
      %1253 = sbr.rel (%p1251) target = $region40
    $region39: #{compact_bilinear_pool3d_forward.1} parent=5 // pred_region
      %s1254 = ssub.s32 %s9, 2
      // Predicated region
      $region41: #{compact_bilinear_pool3d_forward.1} parent=39 // pred_check
        %p1255 = pneg %p106
      $region42: #{compact_bilinear_pool3d_forward.1} parent=39 // pred_check_branch
        %1257 = sbr.rel (%p1255) target = $region44
      $region43: #{compact_bilinear_pool3d_forward.1} parent=39 // pred_region
        %s1258 = smul.u32 14, %s15
        %p1259 = scmp.lt.s32.totalorder %s1258, 97
        %s1260 = scalar_select %p1259, %s1258, 97
        %s1261 = smul.addr %s1260, 4
        %s1262 = scalar_lea.vmem %s3, %s1261
      $region44: #{compact_bilinear_pool3d_forward.1} parent=39 // pred_fallthru
        _
    $region40: #{compact_bilinear_pool3d_forward.1} parent=5 // pred_fallthru
      _
  $region6: #{compact_bilinear_pool3d_forward.1} parent=0 // loop_footer
    %s13 = sadd.s32 1, %s9
  $region7: #{compact_bilinear_pool3d_forward.1} parent=0 // loop_footer_branch
    %8 = sbr.rel target = $region3
  $region8: #{compact_bilinear_pool3d_forward.1} parent=0 // loop_exit
    _

</llo_original>
